<compile_context>
chip_gen: v6e
topology: v6e:2x2x1
jax: 0.10.0
libtpu: 0.0.40
codegen_flags: <defaults>
</compile_context>

<pallas_src>
import math

import jax
import jax.numpy as jnp
from jax.experimental import pallas as pl
from jax.experimental.pallas import tpu as pltpu


def _round_up(a: int, b: int) -> int:
    return (a + b - 1) // b * b


def _default_tiles():
    """Pick (tm, tk) from the local TPU generation's VMEM budget."""
    try:
        vmem = pltpu.get_tpu_info().vmem_capacity_bytes
    except Exception:  # conservative fallback if the query is unavailable
        vmem = 64 * 1024 * 1024
    if vmem >= 100 * 1024 * 1024:   # v5e / v6e: 128 MiB VMEM -> bigger tiles
        return 512, 512
    return 256, 512                  # v7x: 64 MiB per TensorCore


def _make_hgnn_kernel(has_bias: bool):
    def kernel(x_ref, w_ref, b_ref, g_ref, o_ref, acc_ref):
        k = pl.program_id(1)

        @pl.when(k == 0)
        def _init():
            acc_ref[...] = jnp.zeros_like(acc_ref)

        # Stage 1: xw_k = x[k-tile] @ W (+ bias); MXU with f32 accumulation.
        xw = jnp.dot(x_ref[...], w_ref[...], preferred_element_type=jnp.float32)
        if has_bias:
            xw = xw + b_ref[...]          # (tk, Fout) + (1, Fout) broadcast, f32

        # Stage 2: accumulate G[i-tile, k-tile] @ xw_k into the f32 accumulator.
        acc_ref[...] += jnp.dot(g_ref[...], xw.astype(g_ref.dtype),
                                preferred_element_type=jnp.float32)

        @pl.when(k == pl.num_programs(1) - 1)
        def _finalize():
            o_ref[...] = acc_ref[...].astype(o_ref.dtype)

    return kernel


def hgnn_conv(x, G, weight, bias=None, *, compute_dtype=jnp.bfloat16,
              tm=None, tk=None):
    """HGNN_conv forward: G @ (x @ weight + bias).

    x: (N, in_ft), G: (N, N), weight: (in_ft, out_ft), bias: (out_ft,) or None.
    compute_dtype: dtype fed to the MXU (accumulation is always f32).
    """
    N, in_ft = x.shape
    out_ft = weight.shape[1]
    assert G.shape == (N, N), f"G must be (N, N), got {G.shape}"
    out_dtype = x.dtype

    if tm is None or tk is None:
        d_tm, d_tk = _default_tiles()
        tm = d_tm if tm is None else tm
        tk = d_tk if tk is None else tk

    # Lane-dense feature padding; (sublane, lane)-aligned tiles.
    fin_p = _round_up(in_ft, 128)
    fout_p = _round_up(out_ft, 128)
    tm = min(tm, _round_up(N, 16))      # row tile (multiple of 16)
    tk = min(tk, _round_up(N, 128))     # reduction tile (multiple of 128)
    n_rows = _round_up(N, tm)           # padded output-row dim
    n_red = _round_up(N, tk)            # padded reduction dim

    cd = compute_dtype
    x_p = jnp.pad(x.astype(cd), ((0, n_red - N), (0, fin_p - in_ft)))
    w_p = jnp.pad(weight.astype(cd), ((0, fin_p - in_ft), (0, fout_p - out_ft)))
    g_p = jnp.pad(G.astype(cd), ((0, n_rows - N), (0, n_red - N)))

    has_bias = bias is not None
    if has_bias:
        b_p = jnp.pad(bias.astype(jnp.float32).reshape(1, out_ft),
                      ((0, 0), (0, fout_p - out_ft)))
    else:
        b_p = jnp.zeros((1, fout_p), jnp.float32)

    grid = (n_rows // tm, n_red // tk)

    out_p = pl.pallas_call(
        _make_hgnn_kernel(has_bias),
        out_shape=jax.ShapeDtypeStruct((n_rows, fout_p), out_dtype),
        grid_spec=pltpu.PrefetchScalarGridSpec(
            num_scalar_prefetch=0,
            grid=grid,
            in_specs=[
                pl.BlockSpec((tk, fin_p), lambda i, k: (k, 0)),      # x (reduction tile)
                pl.BlockSpec((fin_p, fout_p), lambda i, k: (0, 0)),  # W (resident)
                pl.BlockSpec((1, fout_p), lambda i, k: (0, 0)),      # bias (resident)
                pl.BlockSpec((tm, tk), lambda i, k: (i, k)),         # G tile (streamed)
            ],
            out_specs=pl.BlockSpec((tm, fout_p), lambda i, k: (i, 0)),
            scratch_shapes=[pltpu.VMEM((tm, fout_p), jnp.float32)],
        ),
        compiler_params=pltpu.CompilerParams(
            dimension_semantics=("parallel", "arbitrary")),
    )(x_p, w_p, b_p, g_p)

    return out_p[:N, :out_ft]


def init_hgnn_params(key, in_ft, out_ft, bias=True, dtype=jnp.float32):
    # Mirrors reset_parameters(): uniform(-stdv, stdv) with stdv = 1/sqrt(out_ft)
    stdv = 1.0 / math.sqrt(out_ft)
    kw, kb = jax.random.split(key)
    weight = jax.random.uniform(kw, (in_ft, out_ft), dtype=dtype,
                                minval=-stdv, maxval=stdv)
    b = (jax.random.uniform(kb, (out_ft,), dtype=dtype,
                            minval=-stdv, maxval=stdv) if bias else None)
    return weight, b


if __name__ == "__main__":
    # Small deterministic example. in_ft/out_ft intentionally not multiples of
    # 128 to exercise the lane padding; small explicit tiles exercise the
    # multi-tile (row x reduction) grid and the accumulator path.
    N, in_ft, out_ft = 256, 96, 80
    key = jax.random.PRNGKey(0)
    kx, kg, kp = jax.random.split(key, 3)

    x = jax.random.normal(kx, (N, in_ft), dtype=jnp.float32)
    G = jax.random.normal(kg, (N, N), dtype=jnp.float32)
    weight, bias = init_hgnn_params(kp, in_ft, out_ft, bias=True)

    # f32 MXU inputs, forced 2x2 grid (row tiles + reduction accumulation).
    out_f32 = hgnn_conv(x, G, weight, bias,
                        compute_dtype=jnp.float32, tm=128, tk=128)
    out_f32 = jax.block_until_ready(out_f32)

    # Default bf16 MXU path with auto tile selection.
    out_bf16 = hgnn_conv(x, G, weight, bias)
    out_bf16 = jax.block_until_ready(out_bf16)

    # No-bias path.
    out_nb = hgnn_conv(x, G, weight, None,
                       compute_dtype=jnp.float32, tm=128, tk=128)
    out_nb = jax.block_until_ready(out_nb)

    # Plain-JAX references.
    ref = G @ (x @ weight + bias[None, :])
    ref_nb = G @ (x @ weight)

    def _rel_err(a, b):
        return float(jnp.linalg.norm(a.astype(jnp.float32) - b) /
                     jnp.linalg.norm(b))

    assert out_f32.shape == (N, out_ft)
    assert out_bf16.shape == (N, out_ft)
    assert _rel_err(out_f32, ref) < 2e-2
    assert _rel_err(out_bf16, ref) < 3e-2
    assert _rel_err(out_nb, ref_nb) < 2e-2

    print("KERNEL_OK")
</pallas_src>

<mosaic_0001>
module attributes {stable_mosaic.version = 11 : i64} {
  func.func @kernel(%arg0: i32, %arg1: i32, %arg2: memref<128x128xf32, #tpu.memory_space<vmem>>, %arg3: memref<128x128xf32, #tpu.memory_space<vmem>>, %arg4: memref<1x128xf32, #tpu.memory_space<vmem>>, %arg5: memref<128x128xf32, #tpu.memory_space<vmem>>, %arg6: memref<128x128xf32, #tpu.memory_space<vmem>>, %arg7: memref<128x128xf32, #tpu.memory_space<vmem>>) attributes {dimension_semantics = [#tpu.dimension_semantics<parallel>, #tpu.dimension_semantics<arbitrary>], iteration_bounds = array<i64: 2, 2>, scalar_prefetch = 0 : i64, scratch_operands = 1 : i64, tpu.core_type = #tpu.core_type<tc>, window_params = [{transform_indices = @transform_0, window_bounds = array<i64: 128, 128>}, {pipeline_mode = #tpu.pipeline_mode<synchronous>, transform_indices = @transform_1, window_bounds = array<i64: 128, 128>}, {pipeline_mode = #tpu.pipeline_mode<synchronous>, transform_indices = @transform_2, window_bounds = array<i64: 1, 128>}, {transform_indices = @transform_3, window_bounds = array<i64: 128, 128>}, {transform_indices = @transform_4, window_bounds = array<i64: 128, 128>}]} {
    %c0_i32 = arith.constant 0 : i32
    %0 = arith.cmpi eq, %arg1, %c0_i32 : i32
    %1 = arith.extui %0 : i1 to i32
    %c0_i32_0 = arith.constant 0 : i32
    %2 = arith.cmpi ne, %1, %c0_i32_0 : i32
    scf.if %2 {
      %cst_14 = arith.constant 0.000000e+00 : f32
      %17 = vector.broadcast %cst_14 : f32 to vector<128x128xf32>
      %c0_15 = arith.constant 0 : index
      %c0_16 = arith.constant 0 : index
      %18 = vector.load %arg7[%c0_15, %c0_16] : memref<128x128xf32, #tpu.memory_space<vmem>>, vector<128x128xf32>
      tpu.vector_store %arg7[%c0_15, %c0_16], %17 {strides = array<i32>} : memref<128x128xf32, #tpu.memory_space<vmem>>, vector<128x128xf32>,
    } else {
    }
    %c0 = arith.constant 0 : index
    %c0_1 = arith.constant 0 : index
    %3 = vector.load %arg2[%c0, %c0_1] : memref<128x128xf32, #tpu.memory_space<vmem>>, vector<128x128xf32>
    %c0_2 = arith.constant 0 : index
    %c0_3 = arith.constant 0 : index
    %4 = vector.load %arg3[%c0_2, %c0_3] : memref<128x128xf32, #tpu.memory_space<vmem>>, vector<128x128xf32>
    %cst = arith.constant dense<0.000000e+00> : vector<128x128xf32>
    %5 = tpu.matmul %3, %4, %cst {dimension_numbers = #tpu.dot_dimension_numbers<[1], [0], [0], [1], [0, 0, 1, 1], [], []>} : vector<128x128xf32>, vector<128x128xf32>, vector<128x128xf32> -> vector<128x128xf32>
    %c0_4 = arith.constant 0 : index
    %c0_5 = arith.constant 0 : index
    %6 = vector.load %arg4[%c0_4, %c0_5] : memref<1x128xf32, #tpu.memory_space<vmem>>, vector<1x128xf32>
    %7 = vector.broadcast %6 : vector<1x128xf32> to vector<128x128xf32>
    %8 = arith.addf %5, %7 : vector<128x128xf32>
    %c0_6 = arith.constant 0 : index
    %c0_7 = arith.constant 0 : index
    %9 = vector.load %arg7[%c0_6, %c0_7] : memref<128x128xf32, #tpu.memory_space<vmem>>, vector<128x128xf32>
    %c0_8 = arith.constant 0 : index
    %c0_9 = arith.constant 0 : index
    %10 = vector.load %arg5[%c0_8, %c0_9] : memref<128x128xf32, #tpu.memory_space<vmem>>, vector<128x128xf32>
    %cst_10 = arith.constant dense<0.000000e+00> : vector<128x128xf32>
    %11 = tpu.matmul %10, %8, %cst_10 {dimension_numbers = #tpu.dot_dimension_numbers<[1], [0], [0], [1], [0, 0, 1, 1], [], []>} : vector<128x128xf32>, vector<128x128xf32>, vector<128x128xf32> -> vector<128x128xf32>
    %12 = arith.addf %9, %11 : vector<128x128xf32>
    %c0_11 = arith.constant 0 : index
    %c0_12 = arith.constant 0 : index
    %13 = vector.load %arg7[%c0_11, %c0_12] : memref<128x128xf32, #tpu.memory_space<vmem>>, vector<128x128xf32>
    tpu.vector_store %arg7[%c0_11, %c0_12], %12 {strides = array<i32>} : memref<128x128xf32, #tpu.memory_space<vmem>>, vector<128x128xf32>,
    %c1_i32 = arith.constant 1 : i32
    %14 = arith.cmpi eq, %arg1, %c1_i32 : i32
    %15 = arith.extui %14 : i1 to i32
    %c0_i32_13 = arith.constant 0 : i32
    %16 = arith.cmpi ne, %15, %c0_i32_13 : i32
    scf.if %16 {
      %c0_14 = arith.constant 0 : index
      %c0_15 = arith.constant 0 : index
      %17 = vector.load %arg7[%c0_14, %c0_15] : memref<128x128xf32, #tpu.memory_space<vmem>>, vector<128x128xf32>
      %c0_16 = arith.constant 0 : index
      %c0_17 = arith.constant 0 : index
      %18 = vector.load %arg6[%c0_16, %c0_17] : memref<128x128xf32, #tpu.memory_space<vmem>>, vector<128x128xf32>
      tpu.vector_store %arg6[%c0_16, %c0_17], %17 {strides = array<i32>} : memref<128x128xf32, #tpu.memory_space<vmem>>, vector<128x128xf32>,
    } else {
    }
    return
  }
  func.func @transform_0(%arg0: i32, %arg1: i32) -> (i32, i32) {
    %c0_i32 = arith.constant 0 : i32
    %c0_i32_0 = arith.constant 0 : i32
    return %arg1, %c0_i32 : i32, i32
  }
  func.func @transform_1(%arg0: i32, %arg1: i32) -> (i32, i32) {
    %c0_i32 = arith.constant 0 : i32
    %c0_i32_0 = arith.constant 0 : i32
    %c0_i32_1 = arith.constant 0 : i32
    return %c0_i32, %c0_i32_0 : i32, i32
  }
  func.func @transform_2(%arg0: i32, %arg1: i32) -> (i32, i32) {
    %c0_i32 = arith.constant 0 : i32
    %c0_i32_0 = arith.constant 0 : i32
    %c0_i32_1 = arith.constant 0 : i32
    return %c0_i32, %c0_i32_0 : i32, i32
  }
  func.func @transform_3(%arg0: i32, %arg1: i32) -> (i32, i32) {
    %c0_i32 = arith.constant 0 : i32
    return %arg0, %arg1 : i32, i32
  }
  func.func @transform_4(%arg0: i32, %arg1: i32) -> (i32, i32) {
    %c0_i32 = arith.constant 0 : i32
    %c0_i32_0 = arith.constant 0 : i32
    return %arg0, %c0_i32 : i32, i32
  }
}

</mosaic_0001>

<llo_original>
// kernel: tpu_custom_call.1
$region0: #{tpu_custom_call.1}
  #allocation0 [shape = 'u32[]', space=smem, size = 0x4, offset = 0x4, fixed_abs, tag = 'smem constant byte address 0x4 - core index']
  #allocation1 [shape = 'u32[144,128]{1,0:T(1,128)}', space=vmem, size = 0x12000, scoped, tag = 'internal scratch']
  #allocation2 [shape = 'f32[128,128]{1,0:T(8,128)}', space=vmem, size = 0x10000, scoped, tag = 'scratch operand']
  %s0 = inlined_call_operand.hbm [shape: f32[256,128], index: 0, kind: input, shape index: {}]
  %s1 = inlined_call_operand.hbm [shape: f32[128,128], index: 1, kind: input, shape index: {}]
  %s2 = inlined_call_operand.vmem [shape: f32[1,128], index: 2, kind: input, shape index: {}]
  %s3 = inlined_call_operand.hbm [shape: f32[256,256], index: 3, kind: input, shape index: {}]
  %s4 = inlined_call_operand.hbm [shape: f32[256,128], index: 4, kind: output, shape index: {}]
  %s5 = sld [smem:[#allocation0]]
  $region69: #{tpu_custom_call.1} parent=0
    _
  %s7 = ssub.s32 1, %s5
  %s8 = scalar_select 0, %s7, %s5
  $region1: #{tpu_custom_call.1} parent=0
    #allocation3 [shape = 'u8[131072]{0}', space=vmem, size = 0x20000, scoped, tag = 'input window, operand 0']
    #allocation4 [shape = 's32[2]{0}', space=sflag, size = 0x8, scoped, tag = 'scoped memory for tpu_custom_call.1']
    #allocation5 [shape = 's32[2]{0}', space=sflag, size = 0x8, scoped, tag = 'scoped memory for tpu_custom_call.1']
    #allocation6 [shape = 'u8[65536]{0}', space=vmem, size = 0x10000, scoped, tag = 'input window, operand 1, single buffered']
    #allocation7 [shape = 's32[1]{0}', space=sflag, size = 0x4, scoped, tag = 'scoped memory for tpu_custom_call.1']
    #allocation8 [shape = 'u8[131072]{0}', space=vmem, size = 0x20000, scoped, tag = 'input window, operand 3']
    #allocation9 [shape = 'u8[131072]{0}', space=vmem, size = 0x20000, scoped, tag = 'output window, operand 0']
    %9 = vsyncpa [#allocation4], 0
    %s10 = scalar_lea.sflag [#allocation4], 1
    %11 = vsyncpa %s10, 0
    %12 = vsyncpa [#allocation7], 0
    %13 = vsyncpa [#allocation5], 0
    %s14 = scalar_lea.sflag [#allocation5], 1
    %15 = vsyncpa %s14, 0
    loop: start=0, step=1, limit=6
    $region2: #{tpu_custom_call.1} parent=1 // loop_pre_header
      _
    $region3: #{tpu_custom_call.1} parent=1 // loop_header
      %s17 = sphi 0, %s21
      %p18 = scmp.ge.s32.totalorder %s17, 6
      %s24 = sphi 0, %s36
      %s25 = sphi 0, %s32
      %s26 = sphi 0, %s24
      %s27 = sphi 0, %s25
      %s28 = sphi 0, %s26
      %s29 = sphi 0, %s27
      %s39 = sphi 0, %s41
      %s42 = sphi 0, %s39
      %s43 = sphi 0, %s42
      %s59 = sphi 0, %s43
      %s63 = sphi 0, %s63
      %s65 = sphi 0, %s63
      %s66 = sphi 0, %s65
      %s80 = sphi 0, %s66
      %s84 = sphi 0, %s84
      %s86 = sphi 0, %s84
      %s87 = sphi 0, %s86
      %s101 = sphi 0, %s87
      %s109 = sphi 0, %s111
      %s112 = sphi 0, %s109
      %s113 = sphi 0, %s112
      %s129 = sphi 0, %s113
      %s135 = sphi 0, %s137
      %s138 = sphi 0, %s135
      %s139 = sphi 0, %s138
      %s155 = sphi 0, %s139
    $region4: #{tpu_custom_call.1} parent=1 // loop_header_branch
      %20 = sbr.rel (%p18) target = $region8
    $region5: #{tpu_custom_call.1} parent=1 // loop_body
      %s22 = ssub.s32 %s17, 1
      %s23 = ssub.s32 %s17, 2
      %s30 = sadd.s32 1, %s25
      %p31 = scmp.ge.s32.totalorder %s30, 2
      %s32 = scalar_select %p31, 0, %s30
      %s33 = sadd.s32 1, %s24
      %s34 = scalar_select %p31, %s33, %s24
      %p35 = scmp.ge.s32.totalorder %s34, 2
      %s36 = scalar_select %p35, 0, %s34
      %s37 = ssub.s32 %s25, %s32
      %p38 = scmp.eq.s32.totalorder %s37, 0
      %s40 = sadd.s32 %s39, 1
      %s41 = scalar_select %p38, %s39, %s40
      %p44 = pneg %p38
      %p45 = scmp.eq.s32.totalorder %s17, 3
      %p46 = por %p44, %p45
      %p47 = scmp.ne.s32.totalorder %s39, %s42
      %p48 = scmp.eq.s32.totalorder %s17, 0
      %p49 = por %p47, %p48
      %p50 = scmp.ne.s32.totalorder %s39, %s42
      %p51 = scmp.eq.s32.totalorder %s22, 3
      %p52 = por %p50, %p51
      %p53 = scmp.ne.s32.totalorder %s42, %s43
      %p54 = scmp.eq.s32.totalorder %s22, 0
      %p55 = por %p53, %p54
      %p56 = scmp.ne.s32.totalorder %s42, %s43
      %p57 = scmp.eq.s32.totalorder %s23, 3
      %p58 = por %p56, %p57
      %p60 = scmp.ne.s32.totalorder %s43, %s59
      %p61 = scmp.eq.s32.totalorder %s23, 0
      %p62 = por %p60, %p61
      %s64 = sadd.s32 %s63, 1
      %p67 = scmp.eq.s32.totalorder %s17, 3
      %p68 = scmp.ne.s32.totalorder %s63, %s65
      %p69 = scmp.eq.s32.totalorder %s17, 0
      %p70 = por %p68, %p69
      %p71 = scmp.ne.s32.totalorder %s63, %s65
      %p72 = scmp.eq.s32.totalorder %s22, 3
      %p73 = por %p71, %p72
      %p74 = scmp.ne.s32.totalorder %s65, %s66
      %p75 = scmp.eq.s32.totalorder %s22, 0
      %p76 = por %p74, %p75
      %p77 = scmp.ne.s32.totalorder %s65, %s66
      %p78 = scmp.eq.s32.totalorder %s23, 3
      %p79 = por %p77, %p78
      %p81 = scmp.ne.s32.totalorder %s66, %s80
      %p82 = scmp.eq.s32.totalorder %s23, 0
      %p83 = por %p81, %p82
      %s85 = sadd.s32 %s84, 1
      %p88 = scmp.eq.s32.totalorder %s17, 3
      %p89 = scmp.ne.s32.totalorder %s84, %s86
      %p90 = scmp.eq.s32.totalorder %s17, 0
      %p91 = por %p89, %p90
      %p92 = scmp.ne.s32.totalorder %s84, %s86
      %p93 = scmp.eq.s32.totalorder %s22, 3
      %p94 = por %p92, %p93
      %p95 = scmp.ne.s32.totalorder %s86, %s87
      %p96 = scmp.eq.s32.totalorder %s22, 0
      %p97 = por %p95, %p96
      %p98 = scmp.ne.s32.totalorder %s86, %s87
      %p99 = scmp.eq.s32.totalorder %s23, 3
      %p100 = por %p98, %p99
      %p102 = scmp.ne.s32.totalorder %s87, %s101
      %p103 = scmp.eq.s32.totalorder %s23, 0
      %p104 = por %p102, %p103
      %s105 = ssub.s32 %s24, %s36
      %s106 = ssub.s32 %s25, %s32
      %s107 = sor.u32 %s105, %s106
      %p108 = scmp.eq.s32.totalorder %s107, 0
      %s110 = sadd.s32 %s109, 1
      %s111 = scalar_select %p108, %s109, %s110
      %p114 = pneg %p108
      %p115 = scmp.eq.s32.totalorder %s17, 3
      %p116 = por %p114, %p115
      %p117 = scmp.ne.s32.totalorder %s109, %s112
      %p118 = scmp.eq.s32.totalorder %s17, 0
      %p119 = por %p117, %p118
      %p120 = scmp.ne.s32.totalorder %s109, %s112
      %p121 = scmp.eq.s32.totalorder %s22, 3
      %p122 = por %p120, %p121
      %p123 = scmp.ne.s32.totalorder %s112, %s113
      %p124 = scmp.eq.s32.totalorder %s22, 0
      %p125 = por %p123, %p124
      %p126 = scmp.ne.s32.totalorder %s112, %s113
      %p127 = scmp.eq.s32.totalorder %s23, 3
      %p128 = por %p126, %p127
      %p130 = scmp.ne.s32.totalorder %s113, %s129
      %p131 = scmp.eq.s32.totalorder %s23, 0
      %p132 = por %p130, %p131
      %s133 = ssub.s32 %s24, %s36
      %p134 = scmp.eq.s32.totalorder %s133, 0
      %s136 = sadd.s32 %s135, 1
      %s137 = scalar_select %p134, %s135, %s136
      %p140 = pneg %p134
      %p141 = scmp.eq.s32.totalorder %s17, 3
      %p142 = por %p140, %p141
      %p143 = scmp.ne.s32.totalorder %s135, %s138
      %p144 = scmp.eq.s32.totalorder %s17, 0
      %p145 = por %p143, %p144
      %p146 = scmp.ne.s32.totalorder %s135, %s138
      %p147 = scmp.eq.s32.totalorder %s22, 3
      %p148 = por %p146, %p147
      %p149 = scmp.ne.s32.totalorder %s138, %s139
      %p150 = scmp.eq.s32.totalorder %s22, 0
      %p151 = por %p149, %p150
      %p152 = scmp.ne.s32.totalorder %s138, %s139
      %p153 = scmp.eq.s32.totalorder %s23, 3
      %p154 = por %p152, %p153
      %p156 = scmp.ne.s32.totalorder %s139, %s155
      %p157 = scmp.eq.s32.totalorder %s23, 0
      %p158 = por %p156, %p157
      %p159 = scmp.le.s32.totalorder 1, %s17
      %p160 = scmp.lt.s32.totalorder %s17, 5
      %p161 = pnand %p159, %p160
      %p162 = pneg %p161
      // Predicated region
      $region9: #{tpu_custom_call.1} parent=5 // pred_check
        _
      $region10: #{tpu_custom_call.1} parent=5 // pred_check_branch
        %164 = sbr.rel (%p161) target = $region12
      $region11: #{tpu_custom_call.1} parent=5 // pred_region
        %s165 = ssub.s32 %s17, 1
        // Predicated region
        $region13: #{tpu_custom_call.1} parent=11 // pred_check
          %p166 = pneg %p76
        $region14: #{tpu_custom_call.1} parent=11 // pred_check_branch
          %168 = sbr.rel (%p166) target = $region16
        $region15: #{tpu_custom_call.1} parent=11 // pred_region
          %s170 = ssub.s32 2048, 2048
          %171 = vsyncadd [#allocation7], %s170
          %s172 = sshll.u32 [#allocation6], 4
          %s173 = int_to_ptr.vmem [resolvable:$true] %s172
          %178 = dma.hbm_to_vmem [thread:$0]  %s1, 2048, %s173, [#allocation7], 128, 128, 8
        $region16: #{tpu_custom_call.1} parent=11 // pred_fallthru
          _
        // Predicated region
        $region17: #{tpu_custom_call.1} parent=11 // pred_check
          %p179 = pneg %p97
        $region18: #{tpu_custom_call.1} parent=11 // pred_check_branch
          %181 = sbr.rel (%p179) target = $region20
        $region19: #{tpu_custom_call.1} parent=11 // pred_region
          _
        $region20: #{tpu_custom_call.1} parent=11 // pred_fallthru
          _
      $region12: #{tpu_custom_call.1} parent=5 // pred_fallthru
        _
      %p182 = scmp.lt.s32.totalorder %s17, 4
      // Predicated region
      $region21: #{tpu_custom_call.1} parent=5 // pred_check
        %p183 = pneg %p182
      $region22: #{tpu_custom_call.1} parent=5 // pred_check_branch
        %185 = sbr.rel (%p183) target = $region24
      $region23: #{tpu_custom_call.1} parent=5 // pred_region
        // Predicated region
        $region25: #{tpu_custom_call.1} parent=23 // pred_check
          %p186 = pneg %p49
        $region26: #{tpu_custom_call.1} parent=23 // pred_check_branch
          %188 = sbr.rel (%p186) target = $region28
        $region27: #{tpu_custom_call.1} parent=23 // pred_region
          %s189 = sand.u32 %s17, 1
          %s190 = scalar_lea.sflag [#allocation4], %s189
          %s191 = sand.u32 %s39, 1
          %s192 = smul.addr %s191, 128
          %s193 = scalar_lea.vmem [#allocation3], %s192
          %s194 = smul.u32 16, %s25
          %s196 = ssub.s32 2048, 2048
          %197 = vsyncadd %s190, %s196
          %s198 = smul.addr %s194, 128
          %s199 = scalar_lea.hbm %s0, %s198
          %s200 = sshll.u32 %s193, 4
          %s201 = int_to_ptr.vmem [resolvable:$true] %s200
          %206 = dma.hbm_to_vmem [thread:$0]  %s199, 2048, %s201, %s190, 128, 128, 8
        $region28: #{tpu_custom_call.1} parent=23 // pred_fallthru
          _
        // Predicated region
        $region29: #{tpu_custom_call.1} parent=23 // pred_check
          %p207 = pneg %p119
        $region30: #{tpu_custom_call.1} parent=23 // pred_check_branch
          %209 = sbr.rel (%p207) target = $region32
        $region31: #{tpu_custom_call.1} parent=23 // pred_region
          %s210 = sand.u32 %s17, 1
          %s211 = scalar_lea.sflag [#allocation4], %s210
          %s212 = sand.u32 %s109, 1
          %s213 = smul.addr %s212, 128
          %s214 = scalar_lea.vmem [#allocation8], %s213
          %s215 = smul.u32 16, %s24
          %s217 = ssub.s32 2048, 2048
          %218 = vsyncadd %s211, %s217
          %s219 = smul.addr %s215, 2
          %s220 = sadd.s32 %s25, %s219
          %s221 = smul.addr %s220, 128
          %s222 = scalar_lea.hbm %s3, %s221
          %s223 = sshll.u32 %s214, 4
          %s224 = int_to_ptr.vmem [resolvable:$true] %s223
          %229 = dma.hbm_to_vmem [thread:$0]  %s222, 2048, %s224, %s211, 256, 128, 8
        $region32: #{tpu_custom_call.1} parent=23 // pred_fallthru
          _
      $region24: #{tpu_custom_call.1} parent=5 // pred_fallthru
        _
      %p230 = scmp.le.s32.totalorder 1, %s17
      %p231 = scmp.lt.s32.totalorder %s17, 5
      %p232 = pnand %p230, %p231
      %p233 = pneg %p232
      // Predicated region
      $region33: #{tpu_custom_call.1} parent=5 // pred_check
        _
      $region34: #{tpu_custom_call.1} parent=5 // pred_check_branch
        %235 = sbr.rel (%p232) target = $region36
      $region35: #{tpu_custom_call.1} parent=5 // pred_region
        %s236 = ssub.s32 %s17, 1
        %s237 = sand.u32 %s22, 1
        %s238 = scalar_lea.sflag [#allocation4], %s237
        %s239 = sand.u32 %s42, 1
        %s240 = smul.addr %s239, 128
        %s241 = scalar_lea.vmem [#allocation3], %s240
        // Predicated region
        $region37: #{tpu_custom_call.1} parent=35 // pred_check
          %p242 = pneg %p55
        $region38: #{tpu_custom_call.1} parent=35 // pred_check_branch
          %244 = sbr.rel (%p242) target = $region40
        $region39: #{tpu_custom_call.1} parent=35 // pred_region
          %245 = dma.done %s238, 2048
        $region40: #{tpu_custom_call.1} parent=35 // pred_fallthru
          _
        // Predicated region
        $region41: #{tpu_custom_call.1} parent=35 // pred_check
          %p246 = pneg %p76
        $region42: #{tpu_custom_call.1} parent=35 // pred_check_branch
          %248 = sbr.rel (%p246) target = $region44
        $region43: #{tpu_custom_call.1} parent=35 // pred_region
          %249 = dma.done [#allocation7], 2048
        $region44: #{tpu_custom_call.1} parent=35 // pred_fallthru
          _
        %s250 = sand.u32 %s22, 1
        %s251 = scalar_lea.sflag [#allocation4], %s250
        %s252 = sand.u32 %s112, 1
        %s253 = smul.addr %s252, 128
        %s254 = scalar_lea.vmem [#allocation8], %s253
        // Predicated region
        $region45: #{tpu_custom_call.1} parent=35 // pred_check
          %p255 = pneg %p125
        $region46: #{tpu_custom_call.1} parent=35 // pred_check_branch
          %257 = sbr.rel (%p255) target = $region48
        $region47: #{tpu_custom_call.1} parent=35 // pred_region
          %258 = dma.done %s251, 2048
        $region48: #{tpu_custom_call.1} parent=35 // pred_fallthru
          _
        %s259 = sand.u32 %s22, 1
        %s260 = scalar_lea.sflag [#allocation4], %s259
        %s261 = sand.u32 %s42, 1
        %s262 = smul.addr %s261, 128
        %s263 = scalar_lea.vmem [#allocation3], %s262
        %p264 = pneg %p55
        %p265 = pneg %p52
        %p266 = pneg %p76
        %p267 = pneg %p73
        %p268 = pneg %p97
        %p269 = pneg %p94
        %s270 = sand.u32 %s22, 1
        %s271 = scalar_lea.sflag [#allocation4], %s270
        %s272 = sand.u32 %s112, 1
        %s273 = smul.addr %s272, 128
        %s274 = scalar_lea.vmem [#allocation8], %s273
        %p275 = pneg %p125
        %p276 = pneg %p122
        %p277 = pneg %p151
        %p278 = pneg %p148
        %s279 = sand.u32 %s138, 1
        %s280 = scalar_lea.sflag [#allocation5], %s279
        %s281 = sand.u32 %s138, 1
        %s282 = smul.addr %s281, 128
        %s283 = scalar_lea.vmem [#allocation9], %s282
        %s284 = smul.u32 16, %s27
        %s285 = smul.u32 16, %s26
        %s286 = smul.u32 16, %s26
        %p287 = scmp.eq.s32.totalorder %s27, 0
        // Predicated region
        $region49: #{tpu_custom_call.1} parent=35 // pred_check
          %p288 = pneg %p287
        $region50: #{tpu_custom_call.1} parent=35 // pred_check_branch
          %290 = sbr.rel (%p288) target = $region52
        $region51: #{tpu_custom_call.1} parent=35 // pred_region
          %291 = vst [vmem:[#allocation2] sm:$0xff] 0.0
          %292 = vst [vmem:[#allocation2 + $0x8] sm:$0xff] 0.0
          %293 = vst [vmem:[#allocation2 + $0x10] sm:$0xff] 0.0
          %294 = vst [vmem:[#allocation2 + $0x18] sm:$0xff] 0.0
          %295 = vst [vmem:[#allocation2 + $0x20] sm:$0xff] 0.0
          %296 = vst [vmem:[#allocation2 + $0x28] sm:$0xff] 0.0
          %297 = vst [vmem:[#allocation2 + $0x30] sm:$0xff] 0.0
          %298 = vst [vmem:[#allocation2 + $0x38] sm:$0xff] 0.0
          %299 = vst [vmem:[#allocation2 + $0x40] sm:$0xff] 0.0
          %300 = vst [vmem:[#allocation2 + $0x48] sm:$0xff] 0.0
          %301 = vst [vmem:[#allocation2 + $0x50] sm:$0xff] 0.0
          %302 = vst [vmem:[#allocation2 + $0x58] sm:$0xff] 0.0
          %303 = vst [vmem:[#allocation2 + $0x60] sm:$0xff] 0.0
          %304 = vst [vmem:[#allocation2 + $0x68] sm:$0xff] 0.0
          %305 = vst [vmem:[#allocation2 + $0x70] sm:$0xff] 0.0
          %306 = vst [vmem:[#allocation2 + $0x78] sm:$0xff] 0.0
        $region52: #{tpu_custom_call.1} parent=35 // pred_fallthru
          _
        %v307 = vld [vmem:[%s241] sm:$0xff]
        %v308 = vld [vmem:[%s241 + $0x8] sm:$0xff]
        %v309 = vld [vmem:[%s241 + $0x10] sm:$0xff]
        %v310 = vld [vmem:[%s241 + $0x18] sm:$0xff]
        %v311 = vld [vmem:[%s241 + $0x20] sm:$0xff]
        %v312 = vld [vmem:[%s241 + $0x28] sm:$0xff]
        %v313 = vld [vmem:[%s241 + $0x30] sm:$0xff]
        %v314 = vld [vmem:[%s241 + $0x38] sm:$0xff]
        %v315 = vld [vmem:[%s241 + $0x40] sm:$0xff]
        %v316 = vld [vmem:[%s241 + $0x48] sm:$0xff]
        %v317 = vld [vmem:[%s241 + $0x50] sm:$0xff]
        %v318 = vld [vmem:[%s241 + $0x58] sm:$0xff]
        %v319 = vld [vmem:[%s241 + $0x60] sm:$0xff]
        %v320 = vld [vmem:[%s241 + $0x68] sm:$0xff]
        %v321 = vld [vmem:[%s241 + $0x70] sm:$0xff]
        %v322 = vld [vmem:[%s241 + $0x78] sm:$0xff]
        %v323 = vld [vmem:[#allocation6] sm:$0xff]
        %v324 = vld [vmem:[#allocation6 + $0x8] sm:$0xff]
        %v325 = vld [vmem:[#allocation6 + $0x10] sm:$0xff]
        %v326 = vld [vmem:[#allocation6 + $0x18] sm:$0xff]
        %v327 = vld [vmem:[#allocation6 + $0x20] sm:$0xff]
        %v328 = vld [vmem:[#allocation6 + $0x28] sm:$0xff]
        %v329 = vld [vmem:[#allocation6 + $0x30] sm:$0xff]
        %v330 = vld [vmem:[#allocation6 + $0x38] sm:$0xff]
        %v331 = vld [vmem:[#allocation6 + $0x40] sm:$0xff]
        %v332 = vld [vmem:[#allocation6 + $0x48] sm:$0xff]
        %v333 = vld [vmem:[#allocation6 + $0x50] sm:$0xff]
        %v334 = vld [vmem:[#allocation6 + $0x58] sm:$0xff]
        %v335 = vld [vmem:[#allocation6 + $0x60] sm:$0xff]
        %v336 = vld [vmem:[#allocation6 + $0x68] sm:$0xff]
        %v337 = vld [vmem:[#allocation6 + $0x70] sm:$0xff]
        %v338 = vld [vmem:[#allocation6 + $0x78] sm:$0xff]
        %v339 = vld [vmem:[%s2] sm:$0x1]
        %v341 = vlaneseq
        %v342 = vshrl.u32 %v341, 7
        %v343 = vsub.s32 0, %v342
        %v344 = vrot.slane %v339, %v343
        %346 = vmatprep.subr.mxu0 0.0
        %347 = vmatpush1.msra.mxu0 %v338
        %348 = vmatprep.subr.mxu0 0.0
        %349 = vmatpush1.msra.mxu0 %v337
        %350 = vmatprep.subr.mxu0 0.0
        %351 = vmatpush1.msra.mxu0 %v336
        %352 = vmatprep.subr.mxu0 0.0
        %353 = vmatpush1.msra.mxu0 %v335
        %354 = vmatprep.subr.mxu0 0.0
        %355 = vmatpush1.msra.mxu0 %v334
        %356 = vmatprep.subr.mxu0 0.0
        %357 = vmatpush1.msra.mxu0 %v333
        %358 = vmatprep.subr.mxu0 0.0
        %359 = vmatpush1.msra.mxu0 %v332
        %360 = vmatprep.subr.mxu0 0.0
        %361 = vmatpush1.msra.mxu0 %v331
        %362 = vmatprep.subr.mxu0 0.0
        %363 = vmatpush1.msra.mxu0 %v330
        %364 = vmatprep.subr.mxu0 0.0
        %365 = vmatpush1.msra.mxu0 %v329
        %366 = vmatprep.subr.mxu0 0.0
        %367 = vmatpush1.msra.mxu0 %v328
        %368 = vmatprep.subr.mxu0 0.0
        %369 = vmatpush1.msra.mxu0 %v327
        %370 = vmatprep.subr.mxu0 0.0
        %371 = vmatpush1.msra.mxu0 %v326
        %372 = vmatprep.subr.mxu0 0.0
        %373 = vmatpush1.msra.mxu0 %v325
        %374 = vmatprep.subr.mxu0 0.0
        %375 = vmatpush1.msra.mxu0 %v324
        %376 = vmatprep.subr.mxu0 0.0
        %377 = vmatpush1.msra.mxu0 %v323
        %378 = vmatprep.subr.mxu0 0.0
        %379 = vmatpush2.msra.mxu0 0.0
        %380 = vmatprep.subr.mxu0 0.0
        %381 = vmatpush2.msra.mxu0 0.0
        %382 = vmatprep.subr.mxu0 0.0
        %383 = vmatpush2.msra.mxu0 0.0
        %384 = vmatprep.subr.mxu0 0.0
        %385 = vmatpush2.msra.mxu0 0.0
        %386 = vmatprep.subr.mxu0 0.0
        %387 = vmatpush2.msra.mxu0 0.0
        %388 = vmatprep.subr.mxu0 0.0
        %389 = vmatpush2.msra.mxu0 0.0
        %390 = vmatprep.subr.mxu0 0.0
        %391 = vmatpush2.msra.mxu0 0.0
        %392 = vmatprep.subr.mxu0 0.0
        %393 = vmatpush2.msra.mxu0 0.0
        %394 = vmatprep.subr.mxu0 0.0
        %395 = vmatpush2.msra.mxu0 0.0
        %396 = vmatprep.subr.mxu0 0.0
        %397 = vmatpush2.msra.mxu0 0.0
        %398 = vmatprep.subr.mxu0 0.0
        %399 = vmatpush2.msra.mxu0 0.0
        %400 = vmatprep.subr.mxu0 0.0
        %401 = vmatpush2.msra.mxu0 0.0
        %402 = vmatprep.subr.mxu0 0.0
        %403 = vmatpush2.msra.mxu0 0.0
        %404 = vmatprep.subr.mxu0 0.0
        %405 = vmatpush2.msra.mxu0 0.0
        %406 = vmatprep.subr.mxu0 0.0
        %407 = vmatpush2.msra.mxu0 0.0
        %408 = vmatprep.subr.mxu0 0.0
        %409 = vmatpush2.msra.mxu0 0.0
        %410 = vmatprep.mubr.f32.mxu0 0.0
        %411 = vmatmul.mubr.f32.gmra.mxu0 %v307
        %v412 = vpop.f32.mrf.mxu0
        %v413 = vadd.f32 %v344, %v412
        %v414 = vpop.f32.mrf.mxu0
        %415 = vmatprep.mubr.f32.mxu0 0.0
        %416 = vmatmul.mubr.f32.gmra.mxu0 %v308
        %v417 = vpop.f32.mrf.mxu0
        %v418 = vadd.f32 %v344, %v417
        %v419 = vpop.f32.mrf.mxu0
        %420 = vmatprep.mubr.f32.mxu0 0.0
        %421 = vmatmul.mubr.f32.gmra.mxu0 %v309
        %v422 = vpop.f32.mrf.mxu0
        %v423 = vadd.f32 %v344, %v422
        %v424 = vpop.f32.mrf.mxu0
        %425 = vmatprep.mubr.f32.mxu0 0.0
        %426 = vmatmul.mubr.f32.gmra.mxu0 %v310
        %v427 = vpop.f32.mrf.mxu0
        %v428 = vadd.f32 %v344, %v427
        %v429 = vpop.f32.mrf.mxu0
        %430 = vmatprep.mubr.f32.mxu0 0.0
        %431 = vmatmul.mubr.f32.gmra.mxu0 %v311
        %v432 = vpop.f32.mrf.mxu0
        %v433 = vadd.f32 %v344, %v432
        %v434 = vpop.f32.mrf.mxu0
        %435 = vmatprep.mubr.f32.mxu0 0.0
        %436 = vmatmul.mubr.f32.gmra.mxu0 %v312
        %v437 = vpop.f32.mrf.mxu0
        %v438 = vadd.f32 %v344, %v437
        %v439 = vpop.f32.mrf.mxu0
        %440 = vmatprep.mubr.f32.mxu0 0.0
        %441 = vmatmul.mubr.f32.gmra.mxu0 %v313
        %v442 = vpop.f32.mrf.mxu0
        %v443 = vadd.f32 %v344, %v442
        %v444 = vpop.f32.mrf.mxu0
        %445 = vmatprep.mubr.f32.mxu0 0.0
        %446 = vmatmul.mubr.f32.gmra.mxu0 %v314
        %v447 = vpop.f32.mrf.mxu0
        %v448 = vadd.f32 %v344, %v447
        %v449 = vpop.f32.mrf.mxu0
        %450 = vmatprep.mubr.f32.mxu0 0.0
        %451 = vmatmul.mubr.f32.gmra.mxu0 %v315
        %v452 = vpop.f32.mrf.mxu0
        %v453 = vadd.f32 %v344, %v452
        %v454 = vpop.f32.mrf.mxu0
        %455 = vmatprep.mubr.f32.mxu0 0.0
        %456 = vmatmul.mubr.f32.gmra.mxu0 %v316
        %v457 = vpop.f32.mrf.mxu0
        %v458 = vadd.f32 %v344, %v457
        %v459 = vpop.f32.mrf.mxu0
        %460 = vmatprep.mubr.f32.mxu0 0.0
        %461 = vmatmul.mubr.f32.gmra.mxu0 %v317
        %v462 = vpop.f32.mrf.mxu0
        %v463 = vadd.f32 %v344, %v462
        %v464 = vpop.f32.mrf.mxu0
        %465 = vmatprep.mubr.f32.mxu0 0.0
        %466 = vmatmul.mubr.f32.gmra.mxu0 %v318
        %v467 = vpop.f32.mrf.mxu0
        %v468 = vadd.f32 %v344, %v467
        %v469 = vpop.f32.mrf.mxu0
        %470 = vmatprep.mubr.f32.mxu0 0.0
        %471 = vmatmul.mubr.f32.gmra.mxu0 %v319
        %v472 = vpop.f32.mrf.mxu0
        %v473 = vadd.f32 %v344, %v472
        %v474 = vpop.f32.mrf.mxu0
        %475 = vmatprep.mubr.f32.mxu0 0.0
        %476 = vmatmul.mubr.f32.gmra.mxu0 %v320
        %v477 = vpop.f32.mrf.mxu0
        %v478 = vadd.f32 %v344, %v477
        %v479 = vpop.f32.mrf.mxu0
        %480 = vmatprep.mubr.f32.mxu0 0.0
        %481 = vmatmul.mubr.f32.gmra.mxu0 %v321
        %v482 = vpop.f32.mrf.mxu0
        %v483 = vadd.f32 %v344, %v482
        %v484 = vpop.f32.mrf.mxu0
        %485 = vmatprep.mubr.f32.mxu0 0.0
        %486 = vmatmul.mubr.f32.gmra.mxu0 %v322
        %v487 = vpop.f32.mrf.mxu0
        %v488 = vadd.f32 %v344, %v487
        %v489 = vpop.f32.mrf.mxu0
        %490 = vdwg.mxu0
        %v491 = vld [vmem:[#allocation2] sm:$0xff]
        %v492 = vld [vmem:[#allocation2 + $0x8] sm:$0xff]
        %v493 = vld [vmem:[#allocation2 + $0x10] sm:$0xff]
        %v494 = vld [vmem:[#allocation2 + $0x18] sm:$0xff]
        %v495 = vld [vmem:[#allocation2 + $0x20] sm:$0xff]
        %v496 = vld [vmem:[#allocation2 + $0x28] sm:$0xff]
        %v497 = vld [vmem:[#allocation2 + $0x30] sm:$0xff]
        %v498 = vld [vmem:[#allocation2 + $0x38] sm:$0xff]
        %v499 = vld [vmem:[#allocation2 + $0x40] sm:$0xff]
        %v500 = vld [vmem:[#allocation2 + $0x48] sm:$0xff]
        %v501 = vld [vmem:[#allocation2 + $0x50] sm:$0xff]
        %v502 = vld [vmem:[#allocation2 + $0x58] sm:$0xff]
        %v503 = vld [vmem:[#allocation2 + $0x60] sm:$0xff]
        %v504 = vld [vmem:[#allocation2 + $0x68] sm:$0xff]
        %v505 = vld [vmem:[#allocation2 + $0x70] sm:$0xff]
        %v506 = vld [vmem:[#allocation2 + $0x78] sm:$0xff]
        %v507 = vld [vmem:[%s254] sm:$0xff]
        %v508 = vld [vmem:[%s254 + $0x8] sm:$0xff]
        %v509 = vld [vmem:[%s254 + $0x10] sm:$0xff]
        %v510 = vld [vmem:[%s254 + $0x18] sm:$0xff]
        %v511 = vld [vmem:[%s254 + $0x20] sm:$0xff]
        %v512 = vld [vmem:[%s254 + $0x28] sm:$0xff]
        %v513 = vld [vmem:[%s254 + $0x30] sm:$0xff]
        %v514 = vld [vmem:[%s254 + $0x38] sm:$0xff]
        %v515 = vld [vmem:[%s254 + $0x40] sm:$0xff]
        %v516 = vld [vmem:[%s254 + $0x48] sm:$0xff]
        %v517 = vld [vmem:[%s254 + $0x50] sm:$0xff]
        %v518 = vld [vmem:[%s254 + $0x58] sm:$0xff]
        %v519 = vld [vmem:[%s254 + $0x60] sm:$0xff]
        %v520 = vld [vmem:[%s254 + $0x68] sm:$0xff]
        %v521 = vld [vmem:[%s254 + $0x70] sm:$0xff]
        %v522 = vld [vmem:[%s254 + $0x78] sm:$0xff]
        %523 = vmatprep.subr.mxu0 0.0
        %524 = vmatpush1.msra.mxu0 %v488
        %525 = vmatprep.subr.mxu0 0.0
        %526 = vmatpush1.msra.mxu0 %v483
        %527 = vmatprep.subr.mxu0 0.0
        %528 = vmatpush1.msra.mxu0 %v478
        %529 = vmatprep.subr.mxu0 0.0
        %530 = vmatpush1.msra.mxu0 %v473
        %531 = vmatprep.subr.mxu0 0.0
        %532 = vmatpush1.msra.mxu0 %v468
        %533 = vmatprep.subr.mxu0 0.0
        %534 = vmatpush1.msra.mxu0 %v463
        %535 = vmatprep.subr.mxu0 0.0
        %536 = vmatpush1.msra.mxu0 %v458
        %537 = vmatprep.subr.mxu0 0.0
        %538 = vmatpush1.msra.mxu0 %v453
        %539 = vmatprep.subr.mxu0 0.0
        %540 = vmatpush1.msra.mxu0 %v448
        %541 = vmatprep.subr.mxu0 0.0
        %542 = vmatpush1.msra.mxu0 %v443
        %543 = vmatprep.subr.mxu0 0.0
        %544 = vmatpush1.msra.mxu0 %v438
        %545 = vmatprep.subr.mxu0 0.0
        %546 = vmatpush1.msra.mxu0 %v433
        %547 = vmatprep.subr.mxu0 0.0
        %548 = vmatpush1.msra.mxu0 %v428
        %549 = vmatprep.subr.mxu0 0.0
        %550 = vmatpush1.msra.mxu0 %v423
        %551 = vmatprep.subr.mxu0 0.0
        %552 = vmatpush1.msra.mxu0 %v418
        %553 = vmatprep.subr.mxu0 0.0
        %554 = vmatpush1.msra.mxu0 %v413
        %555 = vmatprep.subr.mxu0 0.0
        %556 = vmatpush2.msra.mxu0 0.0
        %557 = vmatprep.subr.mxu0 0.0
        %558 = vmatpush2.msra.mxu0 0.0
        %559 = vmatprep.subr.mxu0 0.0
        %560 = vmatpush2.msra.mxu0 0.0
        %561 = vmatprep.subr.mxu0 0.0
        %562 = vmatpush2.msra.mxu0 0.0
        %563 = vmatprep.subr.mxu0 0.0
        %564 = vmatpush2.msra.mxu0 0.0
        %565 = vmatprep.subr.mxu0 0.0
        %566 = vmatpush2.msra.mxu0 0.0
        %567 = vmatprep.subr.mxu0 0.0
        %568 = vmatpush2.msra.mxu0 0.0
        %569 = vmatprep.subr.mxu0 0.0
        %570 = vmatpush2.msra.mxu0 0.0
        %571 = vmatprep.subr.mxu0 0.0
        %572 = vmatpush2.msra.mxu0 0.0
        %573 = vmatprep.subr.mxu0 0.0
        %574 = vmatpush2.msra.mxu0 0.0
        %575 = vmatprep.subr.mxu0 0.0
        %576 = vmatpush2.msra.mxu0 0.0
        %577 = vmatprep.subr.mxu0 0.0
        %578 = vmatpush2.msra.mxu0 0.0
        %579 = vmatprep.subr.mxu0 0.0
        %580 = vmatpush2.msra.mxu0 0.0
        %581 = vmatprep.subr.mxu0 0.0
        %582 = vmatpush2.msra.mxu0 0.0
        %583 = vmatprep.subr.mxu0 0.0
        %584 = vmatpush2.msra.mxu0 0.0
        %585 = vmatprep.subr.mxu0 0.0
        %586 = vmatpush2.msra.mxu0 0.0
        %587 = vmatprep.mubr.f32.mxu0 0.0
        %588 = vmatmul.mubr.f32.gmra.mxu0 %v507
        %v589 = vpop.f32.mrf.mxu0
        %v590 = vadd.f32 0.0, %v589
        %v591 = vpop.f32.mrf.mxu0
        %592 = vmatprep.mubr.f32.mxu0 0.0
        %593 = vmatmul.mubr.f32.gmra.mxu0 %v508
        %v594 = vpop.f32.mrf.mxu0
        %v595 = vadd.f32 0.0, %v594
        %v596 = vpop.f32.mrf.mxu0
        %597 = vmatprep.mubr.f32.mxu0 0.0
        %598 = vmatmul.mubr.f32.gmra.mxu0 %v509
        %v599 = vpop.f32.mrf.mxu0
        %v600 = vadd.f32 0.0, %v599
        %v601 = vpop.f32.mrf.mxu0
        %602 = vmatprep.mubr.f32.mxu0 0.0
        %603 = vmatmul.mubr.f32.gmra.mxu0 %v510
        %v604 = vpop.f32.mrf.mxu0
        %v605 = vadd.f32 0.0, %v604
        %v606 = vpop.f32.mrf.mxu0
        %607 = vmatprep.mubr.f32.mxu0 0.0
        %608 = vmatmul.mubr.f32.gmra.mxu0 %v511
        %v609 = vpop.f32.mrf.mxu0
        %v610 = vadd.f32 0.0, %v609
        %v611 = vpop.f32.mrf.mxu0
        %612 = vmatprep.mubr.f32.mxu0 0.0
        %613 = vmatmul.mubr.f32.gmra.mxu0 %v512
        %v614 = vpop.f32.mrf.mxu0
        %v615 = vadd.f32 0.0, %v614
        %v616 = vpop.f32.mrf.mxu0
        %617 = vmatprep.mubr.f32.mxu0 0.0
        %618 = vmatmul.mubr.f32.gmra.mxu0 %v513
        %v619 = vpop.f32.mrf.mxu0
        %v620 = vadd.f32 0.0, %v619
        %v621 = vpop.f32.mrf.mxu0
        %622 = vmatprep.mubr.f32.mxu0 0.0
        %623 = vmatmul.mubr.f32.gmra.mxu0 %v514
        %v624 = vpop.f32.mrf.mxu0
        %v625 = vadd.f32 0.0, %v624
        %v626 = vpop.f32.mrf.mxu0
        %627 = vmatprep.mubr.f32.mxu0 0.0
        %628 = vmatmul.mubr.f32.gmra.mxu0 %v515
        %v629 = vpop.f32.mrf.mxu0
        %v630 = vadd.f32 0.0, %v629
        %v631 = vpop.f32.mrf.mxu0
        %632 = vmatprep.mubr.f32.mxu0 0.0
        %633 = vmatmul.mubr.f32.gmra.mxu0 %v516
        %v634 = vpop.f32.mrf.mxu0
        %v635 = vadd.f32 0.0, %v634
        %v636 = vpop.f32.mrf.mxu0
        %637 = vmatprep.mubr.f32.mxu0 0.0
        %638 = vmatmul.mubr.f32.gmra.mxu0 %v517
        %v639 = vpop.f32.mrf.mxu0
        %v640 = vadd.f32 0.0, %v639
        %v641 = vpop.f32.mrf.mxu0
        %642 = vmatprep.mubr.f32.mxu0 0.0
        %643 = vmatmul.mubr.f32.gmra.mxu0 %v518
        %v644 = vpop.f32.mrf.mxu0
        %v645 = vadd.f32 0.0, %v644
        %v646 = vpop.f32.mrf.mxu0
        %647 = vmatprep.mubr.f32.mxu0 0.0
        %648 = vmatmul.mubr.f32.gmra.mxu0 %v519
        %v649 = vpop.f32.mrf.mxu0
        %v650 = vadd.f32 0.0, %v649
        %v651 = vpop.f32.mrf.mxu0
        %652 = vmatprep.mubr.f32.mxu0 0.0
        %653 = vmatmul.mubr.f32.gmra.mxu0 %v520
        %v654 = vpop.f32.mrf.mxu0
        %v655 = vadd.f32 0.0, %v654
        %v656 = vpop.f32.mrf.mxu0
        %657 = vmatprep.mubr.f32.mxu0 0.0
        %658 = vmatmul.mubr.f32.gmra.mxu0 %v521
        %v659 = vpop.f32.mrf.mxu0
        %v660 = vadd.f32 0.0, %v659
        %v661 = vpop.f32.mrf.mxu0
        %662 = vmatprep.mubr.f32.mxu0 0.0
        %663 = vmatmul.mubr.f32.gmra.mxu0 %v522
        %v664 = vpop.f32.mrf.mxu0
        %v665 = vadd.f32 0.0, %v664
        %v666 = vpop.f32.mrf.mxu0
        %667 = vdwg.mxu0
        %v668 = vadd.f32 %v491, %v590
        %v669 = vadd.f32 %v492, %v595
        %v670 = vadd.f32 %v493, %v600
        %v671 = vadd.f32 %v494, %v605
        %v672 = vadd.f32 %v495, %v610
        %v673 = vadd.f32 %v496, %v615
        %v674 = vadd.f32 %v497, %v620
        %v675 = vadd.f32 %v498, %v625
        %v676 = vadd.f32 %v499, %v630
        %v677 = vadd.f32 %v500, %v635
        %v678 = vadd.f32 %v501, %v640
        %v679 = vadd.f32 %v502, %v645
        %v680 = vadd.f32 %v503, %v650
        %v681 = vadd.f32 %v504, %v655
        %v682 = vadd.f32 %v505, %v660
        %v683 = vadd.f32 %v506, %v665
        %684 = vst [vmem:[#allocation2] sm:$0xff] %v668
        %685 = vst [vmem:[#allocation2 + $0x8] sm:$0xff] %v669
        %686 = vst [vmem:[#allocation2 + $0x10] sm:$0xff] %v670
        %687 = vst [vmem:[#allocation2 + $0x18] sm:$0xff] %v671
        %688 = vst [vmem:[#allocation2 + $0x20] sm:$0xff] %v672
        %689 = vst [vmem:[#allocation2 + $0x28] sm:$0xff] %v673
        %690 = vst [vmem:[#allocation2 + $0x30] sm:$0xff] %v674
        %691 = vst [vmem:[#allocation2 + $0x38] sm:$0xff] %v675
        %692 = vst [vmem:[#allocation2 + $0x40] sm:$0xff] %v676
        %693 = vst [vmem:[#allocation2 + $0x48] sm:$0xff] %v677
        %694 = vst [vmem:[#allocation2 + $0x50] sm:$0xff] %v678
        %695 = vst [vmem:[#allocation2 + $0x58] sm:$0xff] %v679
        %696 = vst [vmem:[#allocation2 + $0x60] sm:$0xff] %v680
        %697 = vst [vmem:[#allocation2 + $0x68] sm:$0xff] %v681
        %698 = vst [vmem:[#allocation2 + $0x70] sm:$0xff] %v682
        %699 = vst [vmem:[#allocation2 + $0x78] sm:$0xff] %v683
        %p700 = scmp.eq.s32.totalorder %s27, 1
        // Predicated region
        $region53: #{tpu_custom_call.1} parent=35 // pred_check
          %p701 = pneg %p700
        $region54: #{tpu_custom_call.1} parent=35 // pred_check_branch
          %703 = sbr.rel (%p701) target = $region56
        $region55: #{tpu_custom_call.1} parent=35 // pred_region
          %v704 = vld [vmem:[#allocation2] sm:$0xff]
          %v705 = vld [vmem:[#allocation2 + $0x8] sm:$0xff]
          %v706 = vld [vmem:[#allocation2 + $0x10] sm:$0xff]
          %v707 = vld [vmem:[#allocation2 + $0x18] sm:$0xff]
          %v708 = vld [vmem:[#allocation2 + $0x20] sm:$0xff]
          %v709 = vld [vmem:[#allocation2 + $0x28] sm:$0xff]
          %v710 = vld [vmem:[#allocation2 + $0x30] sm:$0xff]
          %v711 = vld [vmem:[#allocation2 + $0x38] sm:$0xff]
          %v712 = vld [vmem:[#allocation2 + $0x40] sm:$0xff]
          %v713 = vld [vmem:[#allocation2 + $0x48] sm:$0xff]
          %v714 = vld [vmem:[#allocation2 + $0x50] sm:$0xff]
          %v715 = vld [vmem:[#allocation2 + $0x58] sm:$0xff]
          %v716 = vld [vmem:[#allocation2 + $0x60] sm:$0xff]
          %v717 = vld [vmem:[#allocation2 + $0x68] sm:$0xff]
          %v718 = vld [vmem:[#allocation2 + $0x70] sm:$0xff]
          %v719 = vld [vmem:[#allocation2 + $0x78] sm:$0xff]
          %720 = vst [vmem:[%s283] sm:$0xff] %v704
          %721 = vst [vmem:[%s283 + $0x8] sm:$0xff] %v705
          %722 = vst [vmem:[%s283 + $0x10] sm:$0xff] %v706
          %723 = vst [vmem:[%s283 + $0x18] sm:$0xff] %v707
          %724 = vst [vmem:[%s283 + $0x20] sm:$0xff] %v708
          %725 = vst [vmem:[%s283 + $0x28] sm:$0xff] %v709
          %726 = vst [vmem:[%s283 + $0x30] sm:$0xff] %v710
          %727 = vst [vmem:[%s283 + $0x38] sm:$0xff] %v711
          %728 = vst [vmem:[%s283 + $0x40] sm:$0xff] %v712
          %729 = vst [vmem:[%s283 + $0x48] sm:$0xff] %v713
          %730 = vst [vmem:[%s283 + $0x50] sm:$0xff] %v714
          %731 = vst [vmem:[%s283 + $0x58] sm:$0xff] %v715
          %732 = vst [vmem:[%s283 + $0x60] sm:$0xff] %v716
          %733 = vst [vmem:[%s283 + $0x68] sm:$0xff] %v717
          %734 = vst [vmem:[%s283 + $0x70] sm:$0xff] %v718
          %735 = vst [vmem:[%s283 + $0x78] sm:$0xff] %v719
        $region56: #{tpu_custom_call.1} parent=35 // pred_fallthru
          _
        %s736 = sand.u32 %s138, 1
        %s737 = scalar_lea.sflag [#allocation5], %s736
        %s738 = sand.u32 %s138, 1
        %s739 = smul.addr %s738, 128
        %s740 = scalar_lea.vmem [#allocation9], %s739
        // Predicated region
        $region57: #{tpu_custom_call.1} parent=35 // pred_check
          %p741 = pneg %p148
        $region58: #{tpu_custom_call.1} parent=35 // pred_check_branch
          %743 = sbr.rel (%p741) target = $region60
        $region59: #{tpu_custom_call.1} parent=35 // pred_region
          %s744 = smul.u32 16, %s26
          %s746 = ssub.s32 2048, 2048
          %747 = vsyncadd %s737, %s746
          %s748 = smul.addr %s744, 128
          %s749 = scalar_lea.hbm %s4, %s748
          %s750 = sshll.u32 %s740, 4
          %s751 = int_to_ptr.vmem [resolvable:$true] %s750
          %756 = dma.vmem_to_hbm [thread:$0]  %s751, 2048, %s749, %s737, 128, 128, 8
        $region60: #{tpu_custom_call.1} parent=35 // pred_fallthru
          _
      $region36: #{tpu_custom_call.1} parent=5 // pred_fallthru
        _
      %p757 = scmp.le.s32.totalorder 2, %s17
      // Predicated region
      $region61: #{tpu_custom_call.1} parent=5 // pred_check
        %p758 = pneg %p757
      $region62: #{tpu_custom_call.1} parent=5 // pred_check_branch
        %760 = sbr.rel (%p758) target = $region64
      $region63: #{tpu_custom_call.1} parent=5 // pred_region
        %s761 = ssub.s32 %s17, 2
        // Predicated region
        $region65: #{tpu_custom_call.1} parent=63 // pred_check
          %p762 = pneg %p154
        $region66: #{tpu_custom_call.1} parent=63 // pred_check_branch
          %764 = sbr.rel (%p762) target = $region68
        $region67: #{tpu_custom_call.1} parent=63 // pred_region
          %s765 = sand.u32 %s139, 1
          %s766 = scalar_lea.sflag [#allocation5], %s765
          %s767 = sand.u32 %s139, 1
          %s768 = smul.addr %s767, 128
          %s769 = scalar_lea.vmem [#allocation9], %s768
          %770 = dma.done %s766, 2048
        $region68: #{tpu_custom_call.1} parent=63 // pred_fallthru
          _
      $region64: #{tpu_custom_call.1} parent=5 // pred_fallthru
        _
    $region6: #{tpu_custom_call.1} parent=1 // loop_footer
      %s21 = sadd.s32 1, %s17
    $region7: #{tpu_custom_call.1} parent=1 // loop_footer_branch
      %16 = sbr.rel target = $region3
    $region8: #{tpu_custom_call.1} parent=1 // loop_exit
      _
    %771 = vsyncpa [#allocation4], 1
    %s772 = scalar_lea.sflag [#allocation4], 1
    %773 = vsyncpa %s772, 1
    %774 = vsyncpa [#allocation7], 1
    %775 = vsyncpa [#allocation5], 1
    %s776 = scalar_lea.sflag [#allocation5], 1
    %777 = vsyncpa %s776, 1

</llo_original>
